<compile_context>
chip_gen: v6e
topology: v6e:2x2x1
jax: 0.10.0
libtpu: 0.0.40
codegen_flags: <defaults>
</compile_context>

<pallas_src>
import math

import jax
import jax.numpy as jnp
from jax.experimental import pallas as pl
from jax.experimental.pallas import tpu as pltpu


def _round_up(x, m):
    return ((x + m - 1) // m) * m


# ---------------------------------------------------------------------------
# Kernels
# ---------------------------------------------------------------------------
def _fc_kernel_single(x_ref, w_ref, b_ref, o_ref):
    """One (tm, Cin) x (Cin, H) product; full K contraction in one step."""
    x = x_ref[...].astype(w_ref.dtype)          # in-kernel cast (bf16 fast path)
    acc = jnp.dot(x, w_ref[...], preferred_element_type=jnp.float32)
    o_ref[...] = (acc + b_ref[...]).astype(o_ref.dtype)


def _fc_kernel_ktiled(x_ref, w_ref, b_ref, o_ref, acc_ref):
    """K-split variant (only used when an explicit block_k tiles Cin)."""
    k = pl.program_id(1)

    @pl.when(k == 0)
    def _():
        acc_ref[...] = jnp.zeros_like(acc_ref)

    x = x_ref[...].astype(w_ref.dtype)
    acc_ref[...] += jnp.dot(x, w_ref[...], preferred_element_type=jnp.float32)

    @pl.when(k == pl.num_programs(1) - 1)
    def _():
        o_ref[...] = (acc_ref[...] + b_ref[...]).astype(o_ref.dtype)


# ---------------------------------------------------------------------------
# Wrapper: EncoderWithFC.forward
# ---------------------------------------------------------------------------
def encoder_with_fc(x, w_t, b2, *, hidden_size=None, block_m=512,
                    block_k=None, out_dtype=None):
    """y = x @ w_t + b over the last dim.

    x:    (..., Cin)          any float dtype; cast to w_t.dtype inside kernel
    w_t:  (Cin, H_pad)        nn.Linear weight, pre-transposed (and pre-cast
                              to the compute dtype, H padded to 128) at init
    b2:   (1, H_pad)          float32 bias row, padded to match w_t
    hidden_size: logical H; output is sliced to it if H_pad > H
    """
    *lead, cin = x.shape
    h_pad = w_t.shape[1]
    m = math.prod(lead) if lead else 1
    out_dtype = x.dtype if out_dtype is None else out_dtype

    x2d = x.reshape(m, cin)

    # --- M tile: single step for small problems, big lane/sublane-aligned
    #     tiles otherwise; grid_m may have a ragged last block (Pallas masks).
    if m <= block_m:
        tm = m
    else:
        tm = block_m                      # multiple of 8 by construction (512)
    grid_m = pl.cdiv(m, tm)

    # --- K tile: default is the whole contraction in one step (no VMEM
    #     accumulator round-trip, weight DMA'd once).  Only split K when an
    #     explicit, 128-aligned block_k is requested for very large Cin.
    if block_k is None or cin % 128 != 0 or block_k >= cin or cin % block_k != 0:
        tk = cin
    else:
        tk = block_k
    grid_k = cin // tk

    if grid_k == 1:
        out = pl.pallas_call(
            _fc_kernel_single,
            out_shape=jax.ShapeDtypeStruct((m, h_pad), out_dtype),
            grid=(grid_m,),
            in_specs=[
                pl.BlockSpec((tm, cin), lambda i: (i, 0)),
                pl.BlockSpec((cin, h_pad), lambda i: (0, 0)),   # resident
                pl.BlockSpec((1, h_pad), lambda i: (0, 0)),     # resident
            ],
            out_specs=pl.BlockSpec((tm, h_pad), lambda i: (i, 0)),
            compiler_params=pltpu.CompilerParams(
                dimension_semantics=("parallel",)),
        )(x2d, w_t, b2)
    else:
        out = pl.pallas_call(
            _fc_kernel_ktiled,
            out_shape=jax.ShapeDtypeStruct((m, h_pad), out_dtype),
            grid=(grid_m, grid_k),
            in_specs=[
                pl.BlockSpec((tm, tk), lambda i, k: (i, k)),
                pl.BlockSpec((tk, h_pad), lambda i, k: (k, 0)),
                pl.BlockSpec((1, h_pad), lambda i, k: (0, 0)),
            ],
            out_specs=pl.BlockSpec((tm, h_pad), lambda i, k: (i, 0)),
            scratch_shapes=[pltpu.VMEM((tm, h_pad), jnp.float32)],
            compiler_params=pltpu.CompilerParams(
                dimension_semantics=("parallel", "arbitrary")),
        )(x2d, w_t, b2)

    out = out.reshape(*lead, h_pad)
    if hidden_size is not None and hidden_size != h_pad:
        out = out[..., :hidden_size]
    return out


# ---------------------------------------------------------------------------
# Deterministic parameter init (PyTorch nn.Linear uniform bounds).
# Weight is transposed, H-padded to a multiple of 128, and cast to the compute
# dtype ONCE here (not per forward call).
# ---------------------------------------------------------------------------
def init_params(key, in_channels, hidden_size, compute_dtype=jnp.float32):
    kw, kb = jax.random.split(key)
    bound = 1.0 / (in_channels ** 0.5)
    w = jax.random.uniform(kw, (hidden_size, in_channels), jnp.float32,
                           -bound, bound)
    b = jax.random.uniform(kb, (hidden_size,), jnp.float32, -bound, bound)

    h_pad = _round_up(hidden_size, 128)
    w_t = jnp.transpose(w)
    b_row = b.reshape(1, hidden_size)
    if h_pad != hidden_size:
        w_t = jnp.pad(w_t, ((0, 0), (0, h_pad - hidden_size)))
        b_row = jnp.pad(b_row, ((0, 0), (0, h_pad - hidden_size)))

    return {
        "w": w, "b": b, "hidden_size": hidden_size,
        "w_t": w_t.astype(compute_dtype),        # (Cin, H_pad), compute dtype
        "b_row": b_row.astype(jnp.float32),      # (1, H_pad), f32
    }


if __name__ == "__main__":
    key = jax.random.PRNGKey(0)
    kx, kp = jax.random.split(key)

    # (B, W, C) sequence that Im2Seq feeds into EncoderWithFC.
    B, T, Cin, Hid = 2, 96, 256, 128
    x = jax.random.normal(kx, (B, T, Cin), dtype=jnp.float32)

    # --- f32 path (exact module semantics), single grid step (m <= block_m).
    p32 = init_params(kp, Cin, Hid, compute_dtype=jnp.float32)
    ref = x @ p32["w"].T + p32["b"]

    out = encoder_with_fc(x, p32["w_t"], p32["b_row"], hidden_size=Hid)
    jax.block_until_ready(out)
    assert out.shape == (B, T, Hid)
    assert jnp.allclose(out, ref, atol=5e-3, rtol=5e-3), \
        float(jnp.max(jnp.abs(out - ref)))

    # --- ragged-M path: block_m=128 -> grid_m=2 with a masked partial block.
    out_rag = encoder_with_fc(x, p32["w_t"], p32["b_row"], hidden_size=Hid,
                              block_m=128)
    jax.block_until_ready(out_rag)
    assert jnp.allclose(out_rag, ref, atol=5e-3, rtol=5e-3), \
        float(jnp.max(jnp.abs(out_rag - ref)))

    # --- K-tiled accumulator path (explicit block_k), f32.
    out_kt = encoder_with_fc(x, p32["w_t"], p32["b_row"], hidden_size=Hid,
                             block_m=128, block_k=128)
    jax.block_until_ready(out_kt)
    assert jnp.allclose(out_kt, ref, atol=5e-3, rtol=5e-3), \
        float(jnp.max(jnp.abs(out_kt - ref)))

    # --- bf16 fast path: weight pre-cast at init, x cast inside the kernel.
    #     Reference is built from the same bf16-rounded operands.
    p16 = init_params(kp, Cin, Hid, compute_dtype=jnp.bfloat16)
    out_bf16 = encoder_with_fc(x, p16["w_t"], p16["b_row"], hidden_size=Hid)
    jax.block_until_ready(out_bf16)
    x16 = x.astype(jnp.bfloat16).astype(jnp.float32)
    w16 = p16["w_t"].astype(jnp.float32)
    ref_bf16 = x16 @ w16 + p16["b"]
    assert out_bf16.shape == (B, T, Hid)
    assert jnp.allclose(out_bf16, ref_bf16, atol=2e-3, rtol=2e-3), \
        float(jnp.max(jnp.abs(out_bf16 - ref_bf16)))

    # --- non-128 hidden size: H padded at init, sliced once at the caller.
    Hid2 = 96
    p96 = init_params(kp, Cin, Hid2, compute_dtype=jnp.float32)
    out96 = encoder_with_fc(x, p96["w_t"], p96["b_row"], hidden_size=Hid2)
    jax.block_until_ready(out96)
    ref96 = x @ p96["w"].T + p96["b"]
    assert out96.shape == (B, T, Hid2)
    assert jnp.allclose(out96, ref96, atol=5e-3, rtol=5e-3), \
        float(jnp.max(jnp.abs(out96 - ref96)))

    print("KERNEL_OK")
</pallas_src>

<mosaic_0001>
module attributes {stable_mosaic.version = 11 : i64} {
  func.func @_fc_kernel_single(%arg0: i32, %arg1: memref<192x256xf32, #tpu.memory_space<vmem>>, %arg2: memref<256x128xf32, #tpu.memory_space<vmem>>, %arg3: memref<1x128xf32, #tpu.memory_space<vmem>>, %arg4: memref<192x128xf32, #tpu.memory_space<vmem>>) attributes {dimension_semantics = [#tpu.dimension_semantics<parallel>], iteration_bounds = array<i64: 1>, scalar_prefetch = 0 : i64, scratch_operands = 0 : i64, tpu.core_type = #tpu.core_type<tc>, window_params = [{transform_indices = @transform_0, window_bounds = array<i64: 192, 256>}, {pipeline_mode = #tpu.pipeline_mode<synchronous>, transform_indices = @transform_1, window_bounds = array<i64: 256, 128>}, {pipeline_mode = #tpu.pipeline_mode<synchronous>, transform_indices = @transform_2, window_bounds = array<i64: 1, 128>}, {transform_indices = @transform_3, window_bounds = array<i64: 192, 128>}]} {
    %c0 = arith.constant 0 : index
    %c0_0 = arith.constant 0 : index
    %0 = vector.load %arg1[%c0, %c0_0] : memref<192x256xf32, #tpu.memory_space<vmem>>, vector<192x256xf32>
    %c0_1 = arith.constant 0 : index
    %c0_2 = arith.constant 0 : index
    %1 = vector.load %arg2[%c0_1, %c0_2] : memref<256x128xf32, #tpu.memory_space<vmem>>, vector<256x128xf32>
    %cst = arith.constant dense<0.000000e+00> : vector<192x128xf32>
    %2 = tpu.matmul %0, %1, %cst {dimension_numbers = #tpu.dot_dimension_numbers<[1], [0], [0], [1], [0, 0, 1, 1], [], []>} : vector<192x256xf32>, vector<256x128xf32>, vector<192x128xf32> -> vector<192x128xf32>
    %c0_3 = arith.constant 0 : index
    %c0_4 = arith.constant 0 : index
    %3 = vector.load %arg3[%c0_3, %c0_4] : memref<1x128xf32, #tpu.memory_space<vmem>>, vector<1x128xf32>
    %4 = vector.broadcast %3 : vector<1x128xf32> to vector<192x128xf32>
    %5 = arith.addf %2, %4 : vector<192x128xf32>
    %c0_5 = arith.constant 0 : index
    %c0_6 = arith.constant 0 : index
    %6 = vector.load %arg4[%c0_5, %c0_6] : memref<192x128xf32, #tpu.memory_space<vmem>>, vector<192x128xf32>
    tpu.vector_store %arg4[%c0_5, %c0_6], %5 {strides = array<i32>} : memref<192x128xf32, #tpu.memory_space<vmem>>, vector<192x128xf32>,
    return
  }
  func.func @transform_0(%arg0: i32) -> (i32, i32) {
    %c0_i32 = arith.constant 0 : i32
    %c0_i32_0 = arith.constant 0 : i32
    return %arg0, %c0_i32 : i32, i32
  }
  func.func @transform_1(%arg0: i32) -> (i32, i32) {
    %c0_i32 = arith.constant 0 : i32
    %c0_i32_0 = arith.constant 0 : i32
    %c0_i32_1 = arith.constant 0 : i32
    return %c0_i32, %c0_i32_0 : i32, i32
  }
  func.func @transform_2(%arg0: i32) -> (i32, i32) {
    %c0_i32 = arith.constant 0 : i32
    %c0_i32_0 = arith.constant 0 : i32
    %c0_i32_1 = arith.constant 0 : i32
    return %c0_i32, %c0_i32_0 : i32, i32
  }
  func.func @transform_3(%arg0: i32) -> (i32, i32) {
    %c0_i32 = arith.constant 0 : i32
    %c0_i32_0 = arith.constant 0 : i32
    return %arg0, %c0_i32 : i32, i32
  }
}

</mosaic_0001>

<llo_original>
// kernel: tpu_custom_call.1
$region0: #{tpu_custom_call.1}
  #allocation0 [shape = 'u32[]', space=smem, size = 0x4, offset = 0x4, fixed_abs, tag = 'smem constant byte address 0x4 - core index']
  #allocation1 [shape = 'u32[144,128]{1,0:T(1,128)}', space=vmem, size = 0x12000, scoped, tag = 'internal scratch']
  %s0 = inlined_call_operand.hbm [shape: f32[192,256], index: 0, kind: input, shape index: {}]
  %s1 = inlined_call_operand.hbm [shape: f32[256,128], index: 1, kind: input, shape index: {}]
  %s2 = inlined_call_operand.vmem [shape: f32[1,128], index: 2, kind: input, shape index: {}]
  %s3 = inlined_call_operand.hbm [shape: f32[192,128], index: 3, kind: output, shape index: {}]
  %s4 = sld [smem:[#allocation0]]
  $region30: #{tpu_custom_call.1} parent=0
    _
  %s6 = ssub.s32 1, %s4
  %s7 = scalar_select 0, %s6, %s4
  $region1: #{tpu_custom_call.1} parent=0
    #allocation2 [shape = 'u8[196608]{0}', space=vmem, size = 0x30000, scoped, tag = 'input window, operand 0, single buffered']
    #allocation3 [shape = 's32[1]{0}', space=sflag, size = 0x4, scoped, tag = 'scoped memory for tpu_custom_call.1']
    #allocation4 [shape = 's32[1]{0}', space=sflag, size = 0x4, scoped, tag = 'scoped memory for tpu_custom_call.1']
    #allocation5 [shape = 'u8[131072]{0}', space=vmem, size = 0x20000, scoped, tag = 'input window, operand 1, single buffered']
    #allocation6 [shape = 's32[1]{0}', space=sflag, size = 0x4, scoped, tag = 'scoped memory for tpu_custom_call.1']
    #allocation7 [shape = 'u8[98304]{0}', space=vmem, size = 0x18000, scoped, tag = 'output window, operand 0, single buffered']
    %8 = vsyncpa [#allocation3], 0
    %9 = vsyncpa [#allocation6], 0
    %10 = vsyncpa [#allocation4], 0
    // Predicated region
    $region2: #{tpu_custom_call.1} parent=1 // pred_check
      _
    $region3: #{tpu_custom_call.1} parent=1 // pred_check_branch
      %12 = sbr.rel (0) target = $region5
    $region4: #{tpu_custom_call.1} parent=1 // pred_region
      %s14 = ssub.s32 6144, 6144
      %15 = vsyncadd [#allocation3], %s14
      %s16 = sshll.u32 [#allocation2], 4
      %s17 = int_to_ptr.vmem [resolvable:$true] %s16
      %22 = dma.hbm_to_vmem [thread:$0]  %s0, 6144, %s17, [#allocation3], 256, 256, 16
    $region5: #{tpu_custom_call.1} parent=1 // pred_fallthru
      _
    // Predicated region
    $region6: #{tpu_custom_call.1} parent=1 // pred_check
      _
    $region7: #{tpu_custom_call.1} parent=1 // pred_check_branch
      %24 = sbr.rel (0) target = $region9
    $region8: #{tpu_custom_call.1} parent=1 // pred_region
      %s26 = ssub.s32 4096, 4096
      %27 = vsyncadd [#allocation6], %s26
      %s28 = sshll.u32 [#allocation5], 4
      %s29 = int_to_ptr.vmem [resolvable:$true] %s28
      %34 = dma.hbm_to_vmem [thread:$0]  %s1, 4096, %s29, [#allocation6], 128, 128, 8
    $region9: #{tpu_custom_call.1} parent=1 // pred_fallthru
      _
    // Predicated region
    $region10: #{tpu_custom_call.1} parent=1 // pred_check
      _
    $region11: #{tpu_custom_call.1} parent=1 // pred_check_branch
      %36 = sbr.rel (0) target = $region13
    $region12: #{tpu_custom_call.1} parent=1 // pred_region
      _
    $region13: #{tpu_custom_call.1} parent=1 // pred_fallthru
      _
    // Predicated region
    $region14: #{tpu_custom_call.1} parent=1 // pred_check
      _
    $region15: #{tpu_custom_call.1} parent=1 // pred_check_branch
      %38 = sbr.rel (0) target = $region17
    $region16: #{tpu_custom_call.1} parent=1 // pred_region
      %39 = dma.done [#allocation3], 6144
    $region17: #{tpu_custom_call.1} parent=1 // pred_fallthru
      _
    // Predicated region
    $region18: #{tpu_custom_call.1} parent=1 // pred_check
      _
    $region19: #{tpu_custom_call.1} parent=1 // pred_check_branch
      %41 = sbr.rel (0) target = $region21
    $region20: #{tpu_custom_call.1} parent=1 // pred_region
      %42 = dma.done [#allocation6], 4096
    $region21: #{tpu_custom_call.1} parent=1 // pred_fallthru
      _
    %v43 = vld [vmem:[#allocation2] sm:$0xff]
    %v44 = vld [vmem:[#allocation2 + $0x8] sm:$0xff]
    %v45 = vld [vmem:[#allocation2 + $0x10] sm:$0xff]
    %v46 = vld [vmem:[#allocation2 + $0x18] sm:$0xff]
    %v47 = vld [vmem:[#allocation2 + $0x20] sm:$0xff]
    %v48 = vld [vmem:[#allocation2 + $0x28] sm:$0xff]
    %v49 = vld [vmem:[#allocation2 + $0x30] sm:$0xff]
    %v50 = vld [vmem:[#allocation2 + $0x38] sm:$0xff]
    %v51 = vld [vmem:[#allocation2 + $0x40] sm:$0xff]
    %v52 = vld [vmem:[#allocation2 + $0x48] sm:$0xff]
    %v53 = vld [vmem:[#allocation2 + $0x50] sm:$0xff]
    %v54 = vld [vmem:[#allocation2 + $0x58] sm:$0xff]
    %v55 = vld [vmem:[#allocation2 + $0x60] sm:$0xff]
    %v56 = vld [vmem:[#allocation2 + $0x68] sm:$0xff]
    %v57 = vld [vmem:[#allocation2 + $0x70] sm:$0xff]
    %v58 = vld [vmem:[#allocation2 + $0x78] sm:$0xff]
    %v59 = vld [vmem:[#allocation2 + $0x80] sm:$0xff]
    %v60 = vld [vmem:[#allocation2 + $0x88] sm:$0xff]
    %v61 = vld [vmem:[#allocation2 + $0x90] sm:$0xff]
    %v62 = vld [vmem:[#allocation2 + $0x98] sm:$0xff]
    %v63 = vld [vmem:[#allocation2 + $0xa0] sm:$0xff]
    %v64 = vld [vmem:[#allocation2 + $0xa8] sm:$0xff]
    %v65 = vld [vmem:[#allocation2 + $0xb0] sm:$0xff]
    %v66 = vld [vmem:[#allocation2 + $0xb8] sm:$0xff]
    %v67 = vld [vmem:[#allocation2 + $0xc0] sm:$0xff]
    %v68 = vld [vmem:[#allocation2 + $0xc8] sm:$0xff]
    %v69 = vld [vmem:[#allocation2 + $0xd0] sm:$0xff]
    %v70 = vld [vmem:[#allocation2 + $0xd8] sm:$0xff]
    %v71 = vld [vmem:[#allocation2 + $0xe0] sm:$0xff]
    %v72 = vld [vmem:[#allocation2 + $0xe8] sm:$0xff]
    %v73 = vld [vmem:[#allocation2 + $0xf0] sm:$0xff]
    %v74 = vld [vmem:[#allocation2 + $0xf8] sm:$0xff]
    %v75 = vld [vmem:[#allocation2 + $0x100] sm:$0xff]
    %v76 = vld [vmem:[#allocation2 + $0x108] sm:$0xff]
    %v77 = vld [vmem:[#allocation2 + $0x110] sm:$0xff]
    %v78 = vld [vmem:[#allocation2 + $0x118] sm:$0xff]
    %v79 = vld [vmem:[#allocation2 + $0x120] sm:$0xff]
    %v80 = vld [vmem:[#allocation2 + $0x128] sm:$0xff]
    %v81 = vld [vmem:[#allocation2 + $0x130] sm:$0xff]
    %v82 = vld [vmem:[#allocation2 + $0x138] sm:$0xff]
    %v83 = vld [vmem:[#allocation2 + $0x140] sm:$0xff]
    %v84 = vld [vmem:[#allocation2 + $0x148] sm:$0xff]
    %v85 = vld [vmem:[#allocation2 + $0x150] sm:$0xff]
    %v86 = vld [vmem:[#allocation2 + $0x158] sm:$0xff]
    %v87 = vld [vmem:[#allocation2 + $0x160] sm:$0xff]
    %v88 = vld [vmem:[#allocation2 + $0x168] sm:$0xff]
    %v89 = vld [vmem:[#allocation2 + $0x170] sm:$0xff]
    %v90 = vld [vmem:[#allocation2 + $0x178] sm:$0xff]
    %v91 = vld [vmem:[#allocation5] sm:$0xff]
    %v92 = vld [vmem:[#allocation5 + $0x8] sm:$0xff]
    %v93 = vld [vmem:[#allocation5 + $0x10] sm:$0xff]
    %v94 = vld [vmem:[#allocation5 + $0x18] sm:$0xff]
    %v95 = vld [vmem:[#allocation5 + $0x20] sm:$0xff]
    %v96 = vld [vmem:[#allocation5 + $0x28] sm:$0xff]
    %v97 = vld [vmem:[#allocation5 + $0x30] sm:$0xff]
    %v98 = vld [vmem:[#allocation5 + $0x38] sm:$0xff]
    %v99 = vld [vmem:[#allocation5 + $0x40] sm:$0xff]
    %v100 = vld [vmem:[#allocation5 + $0x48] sm:$0xff]
    %v101 = vld [vmem:[#allocation5 + $0x50] sm:$0xff]
    %v102 = vld [vmem:[#allocation5 + $0x58] sm:$0xff]
    %v103 = vld [vmem:[#allocation5 + $0x60] sm:$0xff]
    %v104 = vld [vmem:[#allocation5 + $0x68] sm:$0xff]
    %v105 = vld [vmem:[#allocation5 + $0x70] sm:$0xff]
    %v106 = vld [vmem:[#allocation5 + $0x78] sm:$0xff]
    %v107 = vld [vmem:[#allocation5 + $0x80] sm:$0xff]
    %v108 = vld [vmem:[#allocation5 + $0x88] sm:$0xff]
    %v109 = vld [vmem:[#allocation5 + $0x90] sm:$0xff]
    %v110 = vld [vmem:[#allocation5 + $0x98] sm:$0xff]
    %v111 = vld [vmem:[#allocation5 + $0xa0] sm:$0xff]
    %v112 = vld [vmem:[#allocation5 + $0xa8] sm:$0xff]
    %v113 = vld [vmem:[#allocation5 + $0xb0] sm:$0xff]
    %v114 = vld [vmem:[#allocation5 + $0xb8] sm:$0xff]
    %v115 = vld [vmem:[#allocation5 + $0xc0] sm:$0xff]
    %v116 = vld [vmem:[#allocation5 + $0xc8] sm:$0xff]
    %v117 = vld [vmem:[#allocation5 + $0xd0] sm:$0xff]
    %v118 = vld [vmem:[#allocation5 + $0xd8] sm:$0xff]
    %v119 = vld [vmem:[#allocation5 + $0xe0] sm:$0xff]
    %v120 = vld [vmem:[#allocation5 + $0xe8] sm:$0xff]
    %v121 = vld [vmem:[#allocation5 + $0xf0] sm:$0xff]
    %v122 = vld [vmem:[#allocation5 + $0xf8] sm:$0xff]
    %v123 = vld [vmem:[%s2] sm:$0x1]
    %v125 = vlaneseq
    %v126 = vshrl.u32 %v125, 7
    %v127 = vsub.s32 0, %v126
    %v128 = vrot.slane %v123, %v127
    %130 = vmatprep.subr.mxu0 0.0
    %131 = vmatpush1.msra.mxu0 %v106
    %132 = vmatprep.subr.mxu0 0.0
    %133 = vmatpush1.msra.mxu0 %v105
    %134 = vmatprep.subr.mxu0 0.0
    %135 = vmatpush1.msra.mxu0 %v104
    %136 = vmatprep.subr.mxu0 0.0
    %137 = vmatpush1.msra.mxu0 %v103
    %138 = vmatprep.subr.mxu0 0.0
    %139 = vmatpush1.msra.mxu0 %v102
    %140 = vmatprep.subr.mxu0 0.0
    %141 = vmatpush1.msra.mxu0 %v101
    %142 = vmatprep.subr.mxu0 0.0
    %143 = vmatpush1.msra.mxu0 %v100
    %144 = vmatprep.subr.mxu0 0.0
    %145 = vmatpush1.msra.mxu0 %v99
    %146 = vmatprep.subr.mxu0 0.0
    %147 = vmatpush1.msra.mxu0 %v98
    %148 = vmatprep.subr.mxu0 0.0
    %149 = vmatpush1.msra.mxu0 %v97
    %150 = vmatprep.subr.mxu0 0.0
    %151 = vmatpush1.msra.mxu0 %v96
    %152 = vmatprep.subr.mxu0 0.0
    %153 = vmatpush1.msra.mxu0 %v95
    %154 = vmatprep.subr.mxu0 0.0
    %155 = vmatpush1.msra.mxu0 %v94
    %156 = vmatprep.subr.mxu0 0.0
    %157 = vmatpush1.msra.mxu0 %v93
    %158 = vmatprep.subr.mxu0 0.0
    %159 = vmatpush1.msra.mxu0 %v92
    %160 = vmatprep.subr.mxu0 0.0
    %161 = vmatpush1.msra.mxu0 %v91
    %162 = vmatprep.subr.mxu0 0.0
    %163 = vmatpush2.msra.mxu0 %v122
    %164 = vmatprep.subr.mxu0 0.0
    %165 = vmatpush2.msra.mxu0 %v121
    %166 = vmatprep.subr.mxu0 0.0
    %167 = vmatpush2.msra.mxu0 %v120
    %168 = vmatprep.subr.mxu0 0.0
    %169 = vmatpush2.msra.mxu0 %v119
    %170 = vmatprep.subr.mxu0 0.0
    %171 = vmatpush2.msra.mxu0 %v118
    %172 = vmatprep.subr.mxu0 0.0
    %173 = vmatpush2.msra.mxu0 %v117
    %174 = vmatprep.subr.mxu0 0.0
    %175 = vmatpush2.msra.mxu0 %v116
    %176 = vmatprep.subr.mxu0 0.0
    %177 = vmatpush2.msra.mxu0 %v115
    %178 = vmatprep.subr.mxu0 0.0
    %179 = vmatpush2.msra.mxu0 %v114
    %180 = vmatprep.subr.mxu0 0.0
    %181 = vmatpush2.msra.mxu0 %v113
    %182 = vmatprep.subr.mxu0 0.0
    %183 = vmatpush2.msra.mxu0 %v112
    %184 = vmatprep.subr.mxu0 0.0
    %185 = vmatpush2.msra.mxu0 %v111
    %186 = vmatprep.subr.mxu0 0.0
    %187 = vmatpush2.msra.mxu0 %v110
    %188 = vmatprep.subr.mxu0 0.0
    %189 = vmatpush2.msra.mxu0 %v109
    %190 = vmatprep.subr.mxu0 0.0
    %191 = vmatpush2.msra.mxu0 %v108
    %192 = vmatprep.subr.mxu0 0.0
    %193 = vmatpush2.msra.mxu0 %v107
    %194 = vmatprep.mubr.f32.mxu0 %v44
    %195 = vmatmul.mubr.f32.gmra.mxu0 %v43
    %v196 = vpop.f32.mrf.mxu0
    %v197 = vadd.f32 %v128, %v196
    %v198 = vpop.f32.mrf.mxu0
    %199 = vmatprep.mubr.f32.mxu0 %v46
    %200 = vmatmul.mubr.f32.gmra.mxu0 %v45
    %v201 = vpop.f32.mrf.mxu0
    %v202 = vadd.f32 %v128, %v201
    %v203 = vpop.f32.mrf.mxu0
    %204 = vmatprep.mubr.f32.mxu0 %v48
    %205 = vmatmul.mubr.f32.gmra.mxu0 %v47
    %v206 = vpop.f32.mrf.mxu0
    %v207 = vadd.f32 %v128, %v206
    %v208 = vpop.f32.mrf.mxu0
    %209 = vmatprep.mubr.f32.mxu0 %v50
    %210 = vmatmul.mubr.f32.gmra.mxu0 %v49
    %v211 = vpop.f32.mrf.mxu0
    %v212 = vadd.f32 %v128, %v211
    %v213 = vpop.f32.mrf.mxu0
    %214 = vmatprep.mubr.f32.mxu0 %v52
    %215 = vmatmul.mubr.f32.gmra.mxu0 %v51
    %v216 = vpop.f32.mrf.mxu0
    %v217 = vadd.f32 %v128, %v216
    %v218 = vpop.f32.mrf.mxu0
    %219 = vmatprep.mubr.f32.mxu0 %v54
    %220 = vmatmul.mubr.f32.gmra.mxu0 %v53
    %v221 = vpop.f32.mrf.mxu0
    %v222 = vadd.f32 %v128, %v221
    %v223 = vpop.f32.mrf.mxu0
    %224 = vmatprep.mubr.f32.mxu0 %v56
    %225 = vmatmul.mubr.f32.gmra.mxu0 %v55
    %v226 = vpop.f32.mrf.mxu0
    %v227 = vadd.f32 %v128, %v226
    %v228 = vpop.f32.mrf.mxu0
    %229 = vmatprep.mubr.f32.mxu0 %v58
    %230 = vmatmul.mubr.f32.gmra.mxu0 %v57
    %v231 = vpop.f32.mrf.mxu0
    %v232 = vadd.f32 %v128, %v231
    %v233 = vpop.f32.mrf.mxu0
    %234 = vmatprep.mubr.f32.mxu0 %v60
    %235 = vmatmul.mubr.f32.gmra.mxu0 %v59
    %v236 = vpop.f32.mrf.mxu0
    %v237 = vadd.f32 %v128, %v236
    %v238 = vpop.f32.mrf.mxu0
    %239 = vmatprep.mubr.f32.mxu0 %v62
    %240 = vmatmul.mubr.f32.gmra.mxu0 %v61
    %v241 = vpop.f32.mrf.mxu0
    %v242 = vadd.f32 %v128, %v241
    %v243 = vpop.f32.mrf.mxu0
    %244 = vmatprep.mubr.f32.mxu0 %v64
    %245 = vmatmul.mubr.f32.gmra.mxu0 %v63
    %v246 = vpop.f32.mrf.mxu0
    %v247 = vadd.f32 %v128, %v246
    %v248 = vpop.f32.mrf.mxu0
    %249 = vmatprep.mubr.f32.mxu0 %v66
    %250 = vmatmul.mubr.f32.gmra.mxu0 %v65
    %v251 = vpop.f32.mrf.mxu0
    %v252 = vadd.f32 %v128, %v251
    %v253 = vpop.f32.mrf.mxu0
    %254 = vmatprep.mubr.f32.mxu0 %v68
    %255 = vmatmul.mubr.f32.gmra.mxu0 %v67
    %v256 = vpop.f32.mrf.mxu0
    %v257 = vadd.f32 %v128, %v256
    %v258 = vpop.f32.mrf.mxu0
    %259 = vmatprep.mubr.f32.mxu0 %v70
    %260 = vmatmul.mubr.f32.gmra.mxu0 %v69
    %v261 = vpop.f32.mrf.mxu0
    %v262 = vadd.f32 %v128, %v261
    %v263 = vpop.f32.mrf.mxu0
    %264 = vmatprep.mubr.f32.mxu0 %v72
    %265 = vmatmul.mubr.f32.gmra.mxu0 %v71
    %v266 = vpop.f32.mrf.mxu0
    %v267 = vadd.f32 %v128, %v266
    %v268 = vpop.f32.mrf.mxu0
    %269 = vmatprep.mubr.f32.mxu0 %v74
    %270 = vmatmul.mubr.f32.gmra.mxu0 %v73
    %v271 = vpop.f32.mrf.mxu0
    %v272 = vadd.f32 %v128, %v271
    %v273 = vpop.f32.mrf.mxu0
    %274 = vmatprep.mubr.f32.mxu0 %v76
    %275 = vmatmul.mubr.f32.gmra.mxu0 %v75
    %v276 = vpop.f32.mrf.mxu0
    %v277 = vadd.f32 %v128, %v276
    %v278 = vpop.f32.mrf.mxu0
    %279 = vmatprep.mubr.f32.mxu0 %v78
    %280 = vmatmul.mubr.f32.gmra.mxu0 %v77
    %v281 = vpop.f32.mrf.mxu0
    %v282 = vadd.f32 %v128, %v281
    %v283 = vpop.f32.mrf.mxu0
    %284 = vmatprep.mubr.f32.mxu0 %v80
    %285 = vmatmul.mubr.f32.gmra.mxu0 %v79
    %v286 = vpop.f32.mrf.mxu0
    %v287 = vadd.f32 %v128, %v286
    %v288 = vpop.f32.mrf.mxu0
    %289 = vmatprep.mubr.f32.mxu0 %v82
    %290 = vmatmul.mubr.f32.gmra.mxu0 %v81
    %v291 = vpop.f32.mrf.mxu0
    %v292 = vadd.f32 %v128, %v291
    %v293 = vpop.f32.mrf.mxu0
    %294 = vmatprep.mubr.f32.mxu0 %v84
    %295 = vmatmul.mubr.f32.gmra.mxu0 %v83
    %v296 = vpop.f32.mrf.mxu0
    %v297 = vadd.f32 %v128, %v296
    %v298 = vpop.f32.mrf.mxu0
    %299 = vmatprep.mubr.f32.mxu0 %v86
    %300 = vmatmul.mubr.f32.gmra.mxu0 %v85
    %v301 = vpop.f32.mrf.mxu0
    %v302 = vadd.f32 %v128, %v301
    %v303 = vpop.f32.mrf.mxu0
    %304 = vmatprep.mubr.f32.mxu0 %v88
    %305 = vmatmul.mubr.f32.gmra.mxu0 %v87
    %v306 = vpop.f32.mrf.mxu0
    %v307 = vadd.f32 %v128, %v306
    %v308 = vpop.f32.mrf.mxu0
    %309 = vmatprep.mubr.f32.mxu0 %v90
    %310 = vmatmul.mubr.f32.gmra.mxu0 %v89
    %v311 = vpop.f32.mrf.mxu0
    %v312 = vadd.f32 %v128, %v311
    %v313 = vpop.f32.mrf.mxu0
    %314 = vdwg.mxu0
    %315 = vst [vmem:[#allocation7] sm:$0xff] %v197
    %316 = vst [vmem:[#allocation7 + $0x8] sm:$0xff] %v202
    %317 = vst [vmem:[#allocation7 + $0x10] sm:$0xff] %v207
    %318 = vst [vmem:[#allocation7 + $0x18] sm:$0xff] %v212
    %319 = vst [vmem:[#allocation7 + $0x20] sm:$0xff] %v217
    %320 = vst [vmem:[#allocation7 + $0x28] sm:$0xff] %v222
    %321 = vst [vmem:[#allocation7 + $0x30] sm:$0xff] %v227
    %322 = vst [vmem:[#allocation7 + $0x38] sm:$0xff] %v232
    %323 = vst [vmem:[#allocation7 + $0x40] sm:$0xff] %v237
    %324 = vst [vmem:[#allocation7 + $0x48] sm:$0xff] %v242
    %325 = vst [vmem:[#allocation7 + $0x50] sm:$0xff] %v247
    %326 = vst [vmem:[#allocation7 + $0x58] sm:$0xff] %v252
    %327 = vst [vmem:[#allocation7 + $0x60] sm:$0xff] %v257
    %328 = vst [vmem:[#allocation7 + $0x68] sm:$0xff] %v262
    %329 = vst [vmem:[#allocation7 + $0x70] sm:$0xff] %v267
    %330 = vst [vmem:[#allocation7 + $0x78] sm:$0xff] %v272
    %331 = vst [vmem:[#allocation7 + $0x80] sm:$0xff] %v277
    %332 = vst [vmem:[#allocation7 + $0x88] sm:$0xff] %v282
    %333 = vst [vmem:[#allocation7 + $0x90] sm:$0xff] %v287
    %334 = vst [vmem:[#allocation7 + $0x98] sm:$0xff] %v292
    %335 = vst [vmem:[#allocation7 + $0xa0] sm:$0xff] %v297
    %336 = vst [vmem:[#allocation7 + $0xa8] sm:$0xff] %v302
    %337 = vst [vmem:[#allocation7 + $0xb0] sm:$0xff] %v307
    %338 = vst [vmem:[#allocation7 + $0xb8] sm:$0xff] %v312
    // Predicated region
    $region22: #{tpu_custom_call.1} parent=1 // pred_check
      _
    $region23: #{tpu_custom_call.1} parent=1 // pred_check_branch
      %340 = sbr.rel (0) target = $region25
    $region24: #{tpu_custom_call.1} parent=1 // pred_region
      %s342 = ssub.s32 3072, 3072
      %343 = vsyncadd [#allocation4], %s342
      %s344 = sshll.u32 [#allocation7], 4
      %s345 = int_to_ptr.vmem [resolvable:$true] %s344
      %350 = dma.vmem_to_hbm [thread:$0]  %s345, 3072, %s3, [#allocation4], 128, 128, 8
    $region25: #{tpu_custom_call.1} parent=1 // pred_fallthru
      _
    // Predicated region
    $region26: #{tpu_custom_call.1} parent=1 // pred_check
      _
    $region27: #{tpu_custom_call.1} parent=1 // pred_check_branch
      %352 = sbr.rel (0) target = $region29
    $region28: #{tpu_custom_call.1} parent=1 // pred_region
      %353 = dma.done [#allocation4], 3072
    $region29: #{tpu_custom_call.1} parent=1 // pred_fallthru
      _
    %354 = vsyncpa [#allocation3], 1
    %355 = vsyncpa [#allocation6], 1
    %356 = vsyncpa [#allocation4], 1

</llo_original>
